<compile_context>
chip_gen: v7x
topology: tpu7x:2x2x1
jax: 0.10.0
libtpu: 0.0.40
codegen_flags: <defaults>
</compile_context>

<pallas_src>
from functools import partial

import jax
import jax.numpy as jnp
from jax.experimental import pallas as pl
from jax.experimental.pallas import tpu as pltpu

_LANES = 128
_SUBLANES = 8


def affine_kernel(x_ref, w_ref, b_ref, o_ref):
    # y = x * w + b (scalar affine); w/b are (1,1) SMEM scalars.
    w = w_ref[0, 0]
    b = b_ref[0, 0]
    o_ref[...] = (x_ref[...] * w + b).astype(o_ref.dtype)


@partial(jax.jit, static_argnames=("block_rows",))
def neural_network_forward(x, weight, bias, *, block_rows=1024):
    """Equivalent of NeuralNetwork.forward: x @ W^T + b with W:(1,1), b:(1,).

    x: (N, 1) array.  Returns (N, 1) array with x.dtype.
    """
    orig_shape = x.shape
    orig_dtype = x.dtype
    n = x.size

    # ---- lane-dense slab: flatten, pad, reshape to (rows, 128) ----
    rows = max(pl.cdiv(n, _LANES), _SUBLANES)
    rows = ((rows + _SUBLANES - 1) // _SUBLANES) * _SUBLANES   # multiple of 8
    blk = min(block_rows, rows)
    blk = ((blk + _SUBLANES - 1) // _SUBLANES) * _SUBLANES     # multiple of 8
    rows = ((rows + blk - 1) // blk) * blk                     # multiple of blk
    n_pad = rows * _LANES

    xf = jnp.pad(x.reshape(-1), (0, n_pad - n))
    x2 = xf.reshape(rows, _LANES)

    w2d = weight.reshape(1, 1).astype(jnp.float32)
    b2d = bias.reshape(1, 1).astype(jnp.float32)

    grid = (rows // blk,)

    out = pl.pallas_call(
        affine_kernel,
        out_shape=jax.ShapeDtypeStruct((rows, _LANES), orig_dtype),
        grid_spec=pltpu.PrefetchScalarGridSpec(
            num_scalar_prefetch=0,
            grid=grid,
            in_specs=[
                # lane-dense input tile
                pl.BlockSpec((blk, _LANES), lambda i: (i, 0)),
                # weight / bias as SMEM scalars (same (1,1) block every step)
                pl.BlockSpec((1, 1), lambda i: (0, 0),
                             memory_space=pltpu.MemorySpace.SMEM),
                pl.BlockSpec((1, 1), lambda i: (0, 0),
                             memory_space=pltpu.MemorySpace.SMEM),
            ],
            out_specs=pl.BlockSpec((blk, _LANES), lambda i: (i, 0)),
        ),
        compiler_params=pltpu.CompilerParams(
            dimension_semantics=("parallel",),
        ),
        input_output_aliases={0: 0},   # reuse padded input slab as output
    )(x2, w2d, b2d)

    return out.reshape(-1)[:n].reshape(orig_shape)


if __name__ == "__main__":
    key = jax.random.PRNGKey(0)
    kx, kw, kb, kx2 = jax.random.split(key, 4)

    # nn.Linear(1,1) init: U(-1/sqrt(fan_in), 1/sqrt(fan_in)) = U(-1, 1)
    weight = jax.random.uniform(kw, (1, 1), jnp.float32, minval=-1.0, maxval=1.0)
    bias = jax.random.uniform(kb, (1,), jnp.float32, minval=-1.0, maxval=1.0)

    # --- small case (grid = 1 block) ---
    batch = 8
    x = jax.random.normal(kx, (batch, 1), jnp.float32)
    out = jax.block_until_ready(neural_network_forward(x, weight, bias))
    ref = x @ weight.T + bias
    assert out.shape == (batch, 1)
    assert jnp.allclose(out, ref, atol=1e-6, rtol=1e-6)

    # --- larger case exercising the multi-block parallel grid + padding ---
    batch2 = 4096
    x2 = jax.random.normal(kx2, (batch2, 1), jnp.float32)
    out2 = jax.block_until_ready(
        neural_network_forward(x2, weight, bias, block_rows=8))
    ref2 = x2 @ weight.T + bias
    assert out2.shape == (batch2, 1)
    assert jnp.allclose(out2, ref2, atol=1e-6, rtol=1e-6)

    print("KERNEL_OK")
</pallas_src>

<mosaic_0001>
module attributes {stable_mosaic.version = 11 : i64} {
  func.func @affine_kernel(%arg0: i32, %arg1: memref<8x128xf32, #tpu.memory_space<vmem>>, %arg2: memref<1x1xf32, #tpu.memory_space<smem>>, %arg3: memref<1x1xf32, #tpu.memory_space<smem>>, %arg4: memref<8x128xf32, #tpu.memory_space<vmem>>) attributes {dimension_semantics = [#tpu.dimension_semantics<parallel>], iteration_bounds = array<i64: 1>, scalar_prefetch = 0 : i64, scratch_operands = 0 : i64, tpu.core_type = #tpu.core_type<tc>, window_params = [{transform_indices = @transform_0, window_bounds = array<i64: 8, 128>}, {transform_indices = @transform_1, window_bounds = array<i64: 1, 1>}, {transform_indices = @transform_2, window_bounds = array<i64: 1, 1>}, {transform_indices = @transform_3, window_bounds = array<i64: 8, 128>}]} {
    %c0 = arith.constant 0 : index
    %c0_0 = arith.constant 0 : index
    %0 = memref.load %arg2[%c0, %c0_0] : memref<1x1xf32, #tpu.memory_space<smem>>
    %c0_1 = arith.constant 0 : index
    %c0_2 = arith.constant 0 : index
    %1 = memref.load %arg3[%c0_1, %c0_2] : memref<1x1xf32, #tpu.memory_space<smem>>
    %c0_3 = arith.constant 0 : index
    %c0_4 = arith.constant 0 : index
    %2 = vector.load %arg1[%c0_3, %c0_4] : memref<8x128xf32, #tpu.memory_space<vmem>>, vector<8x128xf32>
    %3 = vector.broadcast %0 : f32 to vector<8x128xf32>
    %4 = arith.mulf %2, %3 : vector<8x128xf32>
    %5 = vector.broadcast %1 : f32 to vector<8x128xf32>
    %6 = arith.addf %4, %5 : vector<8x128xf32>
    %c0_5 = arith.constant 0 : index
    %c0_6 = arith.constant 0 : index
    %7 = vector.load %arg4[%c0_5, %c0_6] : memref<8x128xf32, #tpu.memory_space<vmem>>, vector<8x128xf32>
    tpu.vector_store %arg4[%c0_5, %c0_6], %6 {strides = array<i32>} : memref<8x128xf32, #tpu.memory_space<vmem>>, vector<8x128xf32>,
    return
  }
  func.func @transform_0(%arg0: i32) -> (i32, i32) {
    %c0_i32 = arith.constant 0 : i32
    %c0_i32_0 = arith.constant 0 : i32
    return %arg0, %c0_i32 : i32, i32
  }
  func.func @transform_1(%arg0: i32) -> (i32, i32) {
    %c0_i32 = arith.constant 0 : i32
    %c0_i32_0 = arith.constant 0 : i32
    %c0_i32_1 = arith.constant 0 : i32
    return %c0_i32, %c0_i32_0 : i32, i32
  }
  func.func @transform_2(%arg0: i32) -> (i32, i32) {
    %c0_i32 = arith.constant 0 : i32
    %c0_i32_0 = arith.constant 0 : i32
    %c0_i32_1 = arith.constant 0 : i32
    return %c0_i32, %c0_i32_0 : i32, i32
  }
  func.func @transform_3(%arg0: i32) -> (i32, i32) {
    %c0_i32 = arith.constant 0 : i32
    %c0_i32_0 = arith.constant 0 : i32
    return %arg0, %c0_i32 : i32, i32
  }
}

</mosaic_0001>

<llo_original>
// kernel: neural_network_forward.1
$region0: #{neural_network_forward.1}
  #allocation0 [shape = 'u32[]', space=smem, size = 0x4, offset = 0x4, fixed_abs, tag = 'smem constant byte address 0x4 - core index']
  #allocation1 [shape = 'u32[144,128]{1,0:T(1,128)}', space=vmem, size = 0x12000, scoped, tag = 'internal scratch']
  #allocation2 [shape = 'f32[1,1]{1,0:T(1,128)S(6)}', space=smem, size = 0x200, scoped, tag = 'scoped memory for neural_network_forward.1']
  #allocation3 [shape = 'f32[1,1]{1,0:T(1,128)S(6)}', space=smem, size = 0x200, scoped, tag = 'scoped memory for neural_network_forward.1']
  %s0 = inlined_call_operand.vmem [shape: f32[8,128], index: 0, kind: input, shape index: {}, may-alias: {0,3}]
  %s1 = inlined_call_operand.<no memory space> [shape: f32[1,1], index: 1, kind: input, shape index: {}]
  %s2 = inlined_call_operand.<no memory space> [shape: f32[1,1], index: 2, kind: input, shape index: {}]
  %s3 = inlined_call_operand.vmem [shape: f32[8,128], index: 3, kind: output, shape index: {}, may-alias: {0,3}]
  %s4 = sld [smem:[#allocation0]]
  $region22: #{neural_network_forward.1} parent=0
    _
  %s6 = ssub.s32 1, %s4
  %s7 = scalar_select 0, %s6, %s4
  %8 = sst [smem:[#allocation2]] %s1
  %9 = sst [smem:[#allocation3]] %s2
  // Predicated region
  $region2: #{neural_network_forward.1} parent=0 // pred_check
    _
  $region3: #{neural_network_forward.1} parent=0 // pred_check_branch
    %11 = sbr.rel (0) target = $region5
  $region4: #{neural_network_forward.1} parent=0 // pred_region
    _
  $region5: #{neural_network_forward.1} parent=0 // pred_fallthru
    _
  // Predicated region
  $region6: #{neural_network_forward.1} parent=0 // pred_check
    _
  $region7: #{neural_network_forward.1} parent=0 // pred_check_branch
    %13 = sbr.rel (0) target = $region9
  $region8: #{neural_network_forward.1} parent=0 // pred_region
    _
  $region9: #{neural_network_forward.1} parent=0 // pred_fallthru
    _
  // Predicated region
  $region10: #{neural_network_forward.1} parent=0 // pred_check
    _
  $region11: #{neural_network_forward.1} parent=0 // pred_check_branch
    %15 = sbr.rel (0) target = $region13
  $region12: #{neural_network_forward.1} parent=0 // pred_region
    _
  $region13: #{neural_network_forward.1} parent=0 // pred_fallthru
    _
  %s16 = sld [smem:[#allocation2]]
  %s17 = sld [smem:[#allocation3]]
  %v18 = vld [vmem:[%s0] sm:$0xff]
  %v19 = vstv %s16
  %v20 = vmul.f32 %v18, %v19
  %v21 = vstv %s17
  %v22 = vadd.f32 %v20, %v21
  %23 = vst [vmem:[%s3] sm:$0xff] %v22
  // Predicated region
  $region14: #{neural_network_forward.1} parent=0 // pred_check
    _
  $region15: #{neural_network_forward.1} parent=0 // pred_check_branch
    %25 = sbr.rel (0) target = $region17
  $region16: #{neural_network_forward.1} parent=0 // pred_region
    _
  $region17: #{neural_network_forward.1} parent=0 // pred_fallthru
    _
  // Predicated region
  $region18: #{neural_network_forward.1} parent=0 // pred_check
    _
  $region19: #{neural_network_forward.1} parent=0 // pred_check_branch
    %27 = sbr.rel (0) target = $region21
  $region20: #{neural_network_forward.1} parent=0 // pred_region
    _
  $region21: #{neural_network_forward.1} parent=0 // pred_fallthru
    _

</llo_original>
